<compile_context>
chip_gen: v5e
topology: v5e:2x2
jax: 0.10.0
libtpu: 0.0.40
codegen_flags: <defaults>
</compile_context>

<pallas_src>
import functools
import math

import jax
import jax.numpy as jnp
from jax import lax
from jax.experimental import pallas as pl
from jax.experimental.pallas import tpu as pltpu


def _round_up(x, m):
    return (x + m - 1) // m * m


def _gelu_exact(h):
    # exact (erf-based) GELU -- matches torch.nn.functional.gelu default
    return 0.5 * h * (1.0 + lax.erf(h * 0.7071067811865476))


def _gelu_tanh(h):
    # tanh approximation (lowers to EUP); selectable via `approximate=True`
    c = 0.7978845608028654  # sqrt(2/pi)
    return 0.5 * h * (1.0 + jnp.tanh(c * (h + 0.044715 * h * h * h)))


def _ffn_kernel(x_ref, w1_ref, b1_ref, w2_ref, b2_ref, o_ref, acc_ref, *,
                ff_chunk, n_chunks, approximate):
    # x_ref:  (tm, Dp)      tile of rows
    # w1_ref: (Dp, Fp)      fully VMEM-resident
    # b1_ref: (1, Fp)
    # w2_ref: (Fp, Dp)
    # b2_ref: (1, Dp)
    # acc_ref:(tm, Dp) f32  per-tile accumulator scratch
    x = x_ref[...]
    acc_ref[...] = jnp.zeros_like(acc_ref)

    def body(c, carry):
        off = pl.multiple_of(c * ff_chunk, 128)
        # fc1 chunk (MXU, f32 accumulate) + bias
        h = jnp.dot(x, w1_ref[:, pl.ds(off, ff_chunk)],
                    preferred_element_type=jnp.float32)
        h = h + b1_ref[:, pl.ds(off, ff_chunk)]
        # nonlinearity
        h = _gelu_tanh(h) if approximate else _gelu_exact(h)
        # fc2 partial product, accumulated in f32
        acc_ref[...] += jnp.dot(h.astype(w2_ref.dtype),
                                w2_ref[pl.ds(off, ff_chunk), :],
                                preferred_element_type=jnp.float32)
        return carry

    lax.fori_loop(0, n_chunks, body, 0, unroll=True)

    o_ref[...] = (acc_ref[...] + b2_ref[...]).astype(o_ref.dtype)


@functools.partial(jax.jit,
                   static_argnames=("block_rows", "ff_chunk", "approximate"))
def position_wise_feed_forward(x, w1, b1, w2, b2, *, block_rows=256,
                               ff_chunk=512, approximate=False):
    """x: (B, S, D); w1: (D, F); b1: (F,); w2: (F, D); b2: (D,) -> (B, S, D).

    Weights are stored pre-transposed as (in, out) so the kernel does plain
    row-major matmuls on the MXU.
    """
    B, S, D = x.shape
    F = w1.shape[1]
    rows = B * S

    # Lane-dense padding: last dims multiples of 128.
    D_pad = _round_up(D, 128)
    F_pad = _round_up(F, 128)

    # Row tile: multiple of 8 sublanes, no larger than the (padded) row count.
    tm = min(block_rows, _round_up(rows, 8))
    tm = _round_up(tm, 8)
    rows_pad = _round_up(rows, tm)

    # ff_dim chunk: multiple of 128 that divides F_pad (gcd keeps it 128-aligned).
    fc = min(_round_up(ff_chunk, 128), F_pad)
    fc = math.gcd(fc, F_pad)
    n_chunks = F_pad // fc

    x2d = jnp.pad(x.reshape(rows, D), ((0, rows_pad - rows), (0, D_pad - D)))
    w1p = jnp.pad(w1, ((0, D_pad - D), (0, F_pad - F)))
    b1p = jnp.pad(b1, ((0, F_pad - F),)).reshape(1, F_pad)
    w2p = jnp.pad(w2, ((0, F_pad - F), (0, D_pad - D)))
    b2p = jnp.pad(b2, ((0, D_pad - D),)).reshape(1, D_pad)

    grid = (rows_pad // tm,)

    # Explicit VMEM budget (single-buffered weights + double-buffered x/out
    # tiles + f32 accumulator + live GELU chunk). Capped at 64 MiB so it fits
    # every generation (v7x has 64 MiB VMEM; v6e could go higher).
    bytes_x = x.dtype.itemsize
    param_bytes = (w1p.size * w1p.dtype.itemsize + w2p.size * w2p.dtype.itemsize
                   + b1p.size * b1p.dtype.itemsize + b2p.size * b2p.dtype.itemsize)
    vmem_needed = (param_bytes
                   + 2 * tm * D_pad * bytes_x     # x tile, double-buffered
                   + 2 * tm * D_pad * bytes_x     # out tile, double-buffered
                   + tm * D_pad * 4               # f32 accumulator scratch
                   + 2 * tm * fc * 4)             # live fc1/GELU chunk
    vmem_limit = int(min(max(vmem_needed * 3 // 2, 16 * 1024 * 1024),
                         64 * 1024 * 1024))

    cost = pl.CostEstimate(
        flops=4 * rows_pad * D_pad * F_pad,            # two matmuls
        transcendentals=rows_pad * F_pad,              # GELU
        bytes_accessed=2 * rows_pad * D_pad * bytes_x + param_bytes,
    )

    kernel = functools.partial(_ffn_kernel, ff_chunk=fc, n_chunks=n_chunks,
                               approximate=approximate)

    out2d = pl.pallas_call(
        kernel,
        out_shape=jax.ShapeDtypeStruct((rows_pad, D_pad), x.dtype),
        grid_spec=pltpu.PrefetchScalarGridSpec(
            num_scalar_prefetch=0,
            grid=grid,
            in_specs=[
                pl.BlockSpec((tm, D_pad), lambda i: (i, 0)),          # x tile
                pl.BlockSpec(memory_space=pltpu.MemorySpace.VMEM),    # W1 (resident)
                pl.BlockSpec(memory_space=pltpu.MemorySpace.VMEM),    # b1
                pl.BlockSpec(memory_space=pltpu.MemorySpace.VMEM),    # W2 (resident)
                pl.BlockSpec(memory_space=pltpu.MemorySpace.VMEM),    # b2
            ],
            out_specs=pl.BlockSpec((tm, D_pad), lambda i: (i, 0)),
            scratch_shapes=[pltpu.VMEM((tm, D_pad), jnp.float32)],
        ),
        compiler_params=pltpu.CompilerParams(
            dimension_semantics=("parallel",),
            vmem_limit_bytes=vmem_limit,
        ),
        cost_estimate=cost,
    )(x2d, w1p, b1p, w2p, b2p)

    return out2d[:rows, :D].reshape(B, S, D)


def _reference(x, w1, b1, w2, b2):
    h = x @ w1 + b1
    h = 0.5 * h * (1.0 + lax.erf(h / jnp.sqrt(2.0)))
    return h @ w2 + b2


if __name__ == "__main__":
    # Small shapes consistent with the module: tokens of width `dim`,
    # hidden width `ff_dim`.
    B, S, dim, ff_dim = 2, 8, 32, 64

    key = jax.random.PRNGKey(0)
    kx, k1, k2, k3, k4 = jax.random.split(key, 5)

    x = jax.random.normal(kx, (B, S, dim), dtype=jnp.float32)

    # nn.Linear(dim, ff_dim): weight (ff_dim, dim), bias (ff_dim,)
    # stored here pre-transposed as (dim, ff_dim) so kernel does x @ W1.
    w1 = jax.random.normal(k1, (dim, ff_dim), dtype=jnp.float32) * 0.05
    b1 = jax.random.normal(k2, (ff_dim,), dtype=jnp.float32) * 0.05
    # nn.Linear(ff_dim, dim): stored as (ff_dim, dim)
    w2 = jax.random.normal(k3, (ff_dim, dim), dtype=jnp.float32) * 0.05
    b2 = jax.random.normal(k4, (dim,), dtype=jnp.float32) * 0.05

    out = position_wise_feed_forward(x, w1, b1, w2, b2)
    out = jax.block_until_ready(out)

    ref = _reference(x, w1, b1, w2, b2)
    assert out.shape == (B, S, dim)
    assert jnp.allclose(out, ref, atol=1e-4, rtol=1e-4)

    print("KERNEL_OK")
</pallas_src>

<mosaic_0001>
module attributes {stable_mosaic.version = 11 : i64} {
  func.func @_ffn_kernel(%arg0: i32, %arg1: memref<16x128xf32, #tpu.memory_space<vmem>>, %arg2: memref<128x128xf32, #tpu.memory_space<vmem>>, %arg3: memref<1x128xf32, #tpu.memory_space<vmem>>, %arg4: memref<128x128xf32, #tpu.memory_space<vmem>>, %arg5: memref<1x128xf32, #tpu.memory_space<vmem>>, %arg6: memref<16x128xf32, #tpu.memory_space<vmem>>, %arg7: memref<16x128xf32, #tpu.memory_space<vmem>>) attributes {dimension_semantics = [#tpu.dimension_semantics<parallel>], iteration_bounds = array<i64: 1>, scalar_prefetch = 0 : i64, scratch_operands = 1 : i64, tpu.core_type = #tpu.core_type<tc>, window_params = [{transform_indices = @transform_0, window_bounds = array<i64: 16, 128>}, {pipeline_mode = #tpu.pipeline_mode<synchronous>, transform_indices = @transform_1, window_bounds = array<i64: 128, 128>}, {pipeline_mode = #tpu.pipeline_mode<synchronous>, transform_indices = @transform_2, window_bounds = array<i64: 1, 128>}, {pipeline_mode = #tpu.pipeline_mode<synchronous>, transform_indices = @transform_3, window_bounds = array<i64: 128, 128>}, {pipeline_mode = #tpu.pipeline_mode<synchronous>, transform_indices = @transform_4, window_bounds = array<i64: 1, 128>}, {transform_indices = @transform_5, window_bounds = array<i64: 16, 128>}]} {
    %c0 = arith.constant 0 : index
    %c0_0 = arith.constant 0 : index
    %0 = vector.load %arg1[%c0, %c0_0] : memref<16x128xf32, #tpu.memory_space<vmem>>, vector<16x128xf32>
    %cst = arith.constant 0.000000e+00 : f32
    %1 = vector.broadcast %cst : f32 to vector<16x128xf32>
    %c0_1 = arith.constant 0 : index
    %c0_2 = arith.constant 0 : index
    %2 = vector.load %arg7[%c0_1, %c0_2] : memref<16x128xf32, #tpu.memory_space<vmem>>, vector<16x128xf32>
    tpu.vector_store %arg7[%c0_1, %c0_2], %1 {strides = array<i32>} : memref<16x128xf32, #tpu.memory_space<vmem>>, vector<16x128xf32>,
    %c0_i32 = arith.constant 0 : i32
    %c128_i32 = arith.constant 128 : i32
    %3 = arith.muli %c0_i32, %c128_i32 : i32
    %4 = tpu.assume_multiple %3, 128 : i32
    %c0_3 = arith.constant 0 : index
    %5 = arith.index_cast %4 : i32 to index
    %6 = vector.load %arg2[%c0_3, %5] : memref<128x128xf32, #tpu.memory_space<vmem>>, vector<128x128xf32>
    %cst_4 = arith.constant dense<0.000000e+00> : vector<16x128xf32>
    %7 = tpu.matmul %0, %6, %cst_4 {dimension_numbers = #tpu.dot_dimension_numbers<[1], [0], [0], [1], [0, 0, 1, 1], [], []>} : vector<16x128xf32>, vector<128x128xf32>, vector<16x128xf32> -> vector<16x128xf32>
    %c0_5 = arith.constant 0 : index
    %8 = arith.index_cast %4 : i32 to index
    %9 = vector.load %arg3[%c0_5, %8] : memref<1x128xf32, #tpu.memory_space<vmem>>, vector<1x128xf32>
    %10 = vector.broadcast %9 : vector<1x128xf32> to vector<16x128xf32>
    %11 = arith.addf %7, %10 : vector<16x128xf32>
    %cst_6 = arith.constant 5.000000e-01 : f32
    %12 = vector.broadcast %cst_6 : f32 to vector<16x128xf32>
    %13 = arith.mulf %12, %11 : vector<16x128xf32>
    %cst_7 = arith.constant 0.707106769 : f32
    %14 = vector.broadcast %cst_7 : f32 to vector<16x128xf32>
    %15 = arith.mulf %11, %14 : vector<16x128xf32>
    %16 = math.erf %15 : vector<16x128xf32>
    %cst_8 = arith.constant 1.000000e+00 : f32
    %17 = vector.broadcast %cst_8 : f32 to vector<16x128xf32>
    %18 = arith.addf %17, %16 : vector<16x128xf32>
    %19 = arith.mulf %13, %18 : vector<16x128xf32>
    %c0_9 = arith.constant 0 : index
    %c0_10 = arith.constant 0 : index
    %20 = vector.load %arg7[%c0_9, %c0_10] : memref<16x128xf32, #tpu.memory_space<vmem>>, vector<16x128xf32>
    %21 = arith.index_cast %4 : i32 to index
    %c0_11 = arith.constant 0 : index
    %22 = vector.load %arg4[%21, %c0_11] : memref<128x128xf32, #tpu.memory_space<vmem>>, vector<128x128xf32>
    %cst_12 = arith.constant dense<0.000000e+00> : vector<16x128xf32>
    %23 = tpu.matmul %19, %22, %cst_12 {dimension_numbers = #tpu.dot_dimension_numbers<[1], [0], [0], [1], [0, 0, 1, 1], [], []>} : vector<16x128xf32>, vector<128x128xf32>, vector<16x128xf32> -> vector<16x128xf32>
    %24 = arith.addf %20, %23 : vector<16x128xf32>
    %c0_13 = arith.constant 0 : index
    %c0_14 = arith.constant 0 : index
    %25 = vector.load %arg7[%c0_13, %c0_14] : memref<16x128xf32, #tpu.memory_space<vmem>>, vector<16x128xf32>
    tpu.vector_store %arg7[%c0_13, %c0_14], %24 {strides = array<i32>} : memref<16x128xf32, #tpu.memory_space<vmem>>, vector<16x128xf32>,
    %c1_i32 = arith.constant 1 : i32
    %c0_15 = arith.constant 0 : index
    %c0_16 = arith.constant 0 : index
    %26 = vector.load %arg7[%c0_15, %c0_16] : memref<16x128xf32, #tpu.memory_space<vmem>>, vector<16x128xf32>
    %c0_17 = arith.constant 0 : index
    %c0_18 = arith.constant 0 : index
    %27 = vector.load %arg5[%c0_17, %c0_18] : memref<1x128xf32, #tpu.memory_space<vmem>>, vector<1x128xf32>
    %28 = vector.broadcast %27 : vector<1x128xf32> to vector<16x128xf32>
    %29 = arith.addf %26, %28 : vector<16x128xf32>
    %c0_19 = arith.constant 0 : index
    %c0_20 = arith.constant 0 : index
    %30 = vector.load %arg6[%c0_19, %c0_20] : memref<16x128xf32, #tpu.memory_space<vmem>>, vector<16x128xf32>
    tpu.vector_store %arg6[%c0_19, %c0_20], %29 {strides = array<i32>} : memref<16x128xf32, #tpu.memory_space<vmem>>, vector<16x128xf32>,
    return
  }
  func.func @transform_0(%arg0: i32) -> (i32, i32) {
    %c0_i32 = arith.constant 0 : i32
    %c0_i32_0 = arith.constant 0 : i32
    return %arg0, %c0_i32 : i32, i32
  }
  func.func @transform_1(%arg0: i32) -> (i32, i32) {
    %c0_i32 = arith.constant 0 : i32
    %c0_i32_0 = arith.constant 0 : i32
    %c0_i32_1 = arith.constant 0 : i32
    return %c0_i32, %c0_i32_0 : i32, i32
  }
  func.func @transform_2(%arg0: i32) -> (i32, i32) {
    %c0_i32 = arith.constant 0 : i32
    %c0_i32_0 = arith.constant 0 : i32
    %c0_i32_1 = arith.constant 0 : i32
    return %c0_i32, %c0_i32_0 : i32, i32
  }
  func.func @transform_3(%arg0: i32) -> (i32, i32) {
    %c0_i32 = arith.constant 0 : i32
    %c0_i32_0 = arith.constant 0 : i32
    %c0_i32_1 = arith.constant 0 : i32
    return %c0_i32, %c0_i32_0 : i32, i32
  }
  func.func @transform_4(%arg0: i32) -> (i32, i32) {
    %c0_i32 = arith.constant 0 : i32
    %c0_i32_0 = arith.constant 0 : i32
    %c0_i32_1 = arith.constant 0 : i32
    return %c0_i32, %c0_i32_0 : i32, i32
  }
  func.func @transform_5(%arg0: i32) -> (i32, i32) {
    %c0_i32 = arith.constant 0 : i32
    %c0_i32_0 = arith.constant 0 : i32
    return %arg0, %c0_i32 : i32, i32
  }
}

</mosaic_0001>

<llo_original>
// kernel: position_wise_feed_forward.1
$region0: #{position_wise_feed_forward.1}
  #allocation0 [shape = 'u32[]', space=smem, size = 0x4, offset = 0x4, fixed_abs, tag = 'smem constant byte address 0x4 - core index']
  #allocation1 [shape = 'u32[72,128]{1,0:T(1,128)}', space=vmem, size = 0x9000, scoped, tag = 'internal scratch']
  #allocation2 [shape = 'f32[16,128]{1,0:T(8,128)}', space=vmem, size = 0x2000, scoped, tag = 'scratch operand']
  %s0 = inlined_call_operand.vmem [shape: f32[16,128], index: 0, kind: input, shape index: {}]
  %s1 = inlined_call_operand.vmem [shape: f32[128,128], index: 1, kind: input, shape index: {}]
  %s2 = inlined_call_operand.vmem [shape: f32[1,128], index: 2, kind: input, shape index: {}]
  %s3 = inlined_call_operand.vmem [shape: f32[128,128], index: 3, kind: input, shape index: {}]
  %s4 = inlined_call_operand.vmem [shape: f32[1,128], index: 4, kind: input, shape index: {}]
  %s5 = inlined_call_operand.vmem [shape: f32[16,128], index: 5, kind: output, shape index: {}]
  %s6 = sld [smem:[#allocation0]]
  $region30: #{position_wise_feed_forward.1} parent=0
    _
  %s8 = ssub.s32 1, %s6
  %s9 = scalar_select 0, %s8, %s6
  // Predicated region
  $region2: #{position_wise_feed_forward.1} parent=0 // pred_check
    _
  $region3: #{position_wise_feed_forward.1} parent=0 // pred_check_branch
    %11 = sbr.rel (0) target = $region5
  $region4: #{position_wise_feed_forward.1} parent=0 // pred_region
    _
  $region5: #{position_wise_feed_forward.1} parent=0 // pred_fallthru
    _
  // Predicated region
  $region6: #{position_wise_feed_forward.1} parent=0 // pred_check
    _
  $region7: #{position_wise_feed_forward.1} parent=0 // pred_check_branch
    %13 = sbr.rel (0) target = $region9
  $region8: #{position_wise_feed_forward.1} parent=0 // pred_region
    _
  $region9: #{position_wise_feed_forward.1} parent=0 // pred_fallthru
    _
  // Predicated region
  $region10: #{position_wise_feed_forward.1} parent=0 // pred_check
    _
  $region11: #{position_wise_feed_forward.1} parent=0 // pred_check_branch
    %15 = sbr.rel (0) target = $region13
  $region12: #{position_wise_feed_forward.1} parent=0 // pred_region
    _
  $region13: #{position_wise_feed_forward.1} parent=0 // pred_fallthru
    _
  // Predicated region
  $region14: #{position_wise_feed_forward.1} parent=0 // pred_check
    _
  $region15: #{position_wise_feed_forward.1} parent=0 // pred_check_branch
    %17 = sbr.rel (0) target = $region17
  $region16: #{position_wise_feed_forward.1} parent=0 // pred_region
    _
  $region17: #{position_wise_feed_forward.1} parent=0 // pred_fallthru
    _
  // Predicated region
  $region18: #{position_wise_feed_forward.1} parent=0 // pred_check
    _
  $region19: #{position_wise_feed_forward.1} parent=0 // pred_check_branch
    %19 = sbr.rel (0) target = $region21
  $region20: #{position_wise_feed_forward.1} parent=0 // pred_region
    _
  $region21: #{position_wise_feed_forward.1} parent=0 // pred_fallthru
    _
  %v20 = vld [vmem:[%s0] sm:$0xff]
  %v21 = vld [vmem:[%s0 + $0x8] sm:$0xff]
  %22 = vst [vmem:[#allocation2] sm:$0xff] 0.0
  %23 = vst [vmem:[#allocation2 + $0x8] sm:$0xff] 0.0
  %v24 = vld [vmem:[%s1] sm:$0xff]
  %v25 = vld [vmem:[%s1 + $0x8] sm:$0xff]
  %v26 = vld [vmem:[%s1 + $0x10] sm:$0xff]
  %v27 = vld [vmem:[%s1 + $0x18] sm:$0xff]
  %v28 = vld [vmem:[%s1 + $0x20] sm:$0xff]
  %v29 = vld [vmem:[%s1 + $0x28] sm:$0xff]
  %v30 = vld [vmem:[%s1 + $0x30] sm:$0xff]
  %v31 = vld [vmem:[%s1 + $0x38] sm:$0xff]
  %v32 = vld [vmem:[%s1 + $0x40] sm:$0xff]
  %v33 = vld [vmem:[%s1 + $0x48] sm:$0xff]
  %v34 = vld [vmem:[%s1 + $0x50] sm:$0xff]
  %v35 = vld [vmem:[%s1 + $0x58] sm:$0xff]
  %v36 = vld [vmem:[%s1 + $0x60] sm:$0xff]
  %v37 = vld [vmem:[%s1 + $0x68] sm:$0xff]
  %v38 = vld [vmem:[%s1 + $0x70] sm:$0xff]
  %v39 = vld [vmem:[%s1 + $0x78] sm:$0xff]
  %v40 = vld [vmem:[%s2] sm:$0x1]
  %v42 = vperm.slane %v40, 0
  %44 = vmatpush.msra.mxu0 %v39
  %45 = vmatpush.msra.mxu0 %v38
  %46 = vmatpush.msra.mxu0 %v37
  %47 = vmatpush.msra.mxu0 %v36
  %48 = vmatpush.msra.mxu0 %v35
  %49 = vmatpush.msra.mxu0 %v34
  %50 = vmatpush.msra.mxu0 %v33
  %51 = vmatpush.msra.mxu0 %v32
  %52 = vmatpush.msra.mxu0 %v31
  %53 = vmatpush.msra.mxu0 %v30
  %54 = vmatpush.msra.mxu0 %v29
  %55 = vmatpush.msra.mxu0 %v28
  %56 = vmatpush.msra.mxu0 %v27
  %57 = vmatpush.msra.mxu0 %v26
  %58 = vmatpush.msra.mxu0 %v25
  %59 = vmatpush.msra.mxu0 %v24
  %60 = vmatmul.f32.gmra.mxu0 %v20
  %v61 = vpop.f32.mrf.mxu0
  %v62 = vadd.f32 %v42, %v61
  %63 = vmatmul.f32.gmra.mxu0 %v21
  %v64 = vpop.f32.mrf.mxu0
  %v65 = vadd.f32 %v42, %v64
  %66 = vdwg.mxu0
  %v67 = vmul.f32 %v62, 0.5
  %v68 = vmul.f32 %v65, 0.5
  %v69 = vmul.f32 %v62, 0.70710677
  %v70 = vmul.f32 %v65, 0.70710677
  %v71 = vmul.f32 %v69, %v69
  %v72 = vmin.f32 16.0, %v71
  %v73 = vmul.f32 %v72, 2.1237322e-06
  %v74 = vadd.f32 %v73, 0.00028619796
  %v75 = vmul.f32 %v72, %v74
  %v76 = vadd.f32 %v75, 0.0036580483
  %v77 = vmul.f32 %v72, %v76
  %v78 = vadd.f32 %v77, 0.05243302
  %v79 = vmul.f32 %v72, %v78
  %v80 = vadd.f32 %v79, 0.18741608
  %v81 = vmul.f32 %v72, %v80
  %v82 = vadd.f32 %v81, 1.1283791
  %v83 = vmul.f32 %v69, %v82
  %v84 = vmul.f32 %v72, 3.8918573e-05
  %v85 = vadd.f32 %v84, 0.001143296
  %v86 = vmul.f32 %v72, %v85
  %v87 = vadd.f32 %v86, 0.014752088
  %v88 = vmul.f32 %v72, %v87
  %v89 = vadd.f32 %v88, 0.112945676
  %v90 = vmul.f32 %v72, %v89
  %v91 = vadd.f32 %v90, 0.4994258
  %v92 = vmul.f32 %v72, %v91
  %v93 = vadd.f32 %v92, 1.0
  %v94 = vrcp.pop %v93
  %v95 = vmul.f32 %v93, %v94
  %v96 = vsub.f32 1.0, %v95
  %v97 = vmul.f32 %v94, %v96
  %v98 = vadd.f32 %v94, %v97
  %vm99 = vweird.f32 %v93
  %vm100 = vweird.f32 %v94
  %vm101 = vmor %vm99, %vm100
  %v102 = vsel %vm101, %v94, %v98
  %v103 = vand.u32 2147483647, %v93
  %vm104 = vcmp.eq.f32.partialorder %v103, 8.507059e+37
  %v105 = vand.u32 %v93, 2147483648
  %v106 = vor.u32 1.1754944e-38, %v105
  %v107 = vsel %vm104, %v106, %v102
  %v108 = vmul.f32 %v83, %v107
  %v109 = vmin.f32 %v108, 1.0
  %v110 = vmax.f32 %v109, -1.0
  %v111 = vmul.f32 %v70, %v70
  %v112 = vmin.f32 16.0, %v111
  %v113 = vmul.f32 %v112, 2.1237322e-06
  %v114 = vadd.f32 %v113, 0.00028619796
  %v115 = vmul.f32 %v112, %v114
  %v116 = vadd.f32 %v115, 0.0036580483
  %v117 = vmul.f32 %v112, %v116
  %v118 = vadd.f32 %v117, 0.05243302
  %v119 = vmul.f32 %v112, %v118
  %v120 = vadd.f32 %v119, 0.18741608
  %v121 = vmul.f32 %v112, %v120
  %v122 = vadd.f32 %v121, 1.1283791
  %v123 = vmul.f32 %v70, %v122
  %v124 = vmul.f32 %v112, 3.8918573e-05
  %v125 = vadd.f32 %v124, 0.001143296
  %v126 = vmul.f32 %v112, %v125
  %v127 = vadd.f32 %v126, 0.014752088
  %v128 = vmul.f32 %v112, %v127
  %v129 = vadd.f32 %v128, 0.112945676
  %v130 = vmul.f32 %v112, %v129
  %v131 = vadd.f32 %v130, 0.4994258
  %v132 = vmul.f32 %v112, %v131
  %v133 = vadd.f32 %v132, 1.0
  %v134 = vrcp.pop %v133
  %v135 = vmul.f32 %v133, %v134
  %v136 = vsub.f32 1.0, %v135
  %v137 = vmul.f32 %v134, %v136
  %v138 = vadd.f32 %v134, %v137
  %vm139 = vweird.f32 %v133
  %vm140 = vweird.f32 %v134
  %vm141 = vmor %vm139, %vm140
  %v142 = vsel %vm141, %v134, %v138
  %v143 = vand.u32 2147483647, %v133
  %vm144 = vcmp.eq.f32.partialorder %v143, 8.507059e+37
  %v145 = vand.u32 %v133, 2147483648
  %v146 = vor.u32 1.1754944e-38, %v145
  %v147 = vsel %vm144, %v146, %v142
  %v148 = vmul.f32 %v123, %v147
  %v149 = vmin.f32 %v148, 1.0
  %v150 = vmax.f32 %v149, -1.0
  %v151 = vadd.f32 %v110, 1.0
  %v152 = vadd.f32 %v150, 1.0
  %v153 = vmul.f32 %v67, %v151
  %v154 = vmul.f32 %v68, %v152
  %v155 = vld [vmem:[#allocation2] sm:$0xff]
  %v156 = vld [vmem:[#allocation2 + $0x8] sm:$0xff]
  %v157 = vld [vmem:[%s3] sm:$0xff]
  %v158 = vld [vmem:[%s3 + $0x8] sm:$0xff]
  %v159 = vld [vmem:[%s3 + $0x10] sm:$0xff]
  %v160 = vld [vmem:[%s3 + $0x18] sm:$0xff]
  %v161 = vld [vmem:[%s3 + $0x20] sm:$0xff]
  %v162 = vld [vmem:[%s3 + $0x28] sm:$0xff]
  %v163 = vld [vmem:[%s3 + $0x30] sm:$0xff]
  %v164 = vld [vmem:[%s3 + $0x38] sm:$0xff]
  %v165 = vld [vmem:[%s3 + $0x40] sm:$0xff]
  %v166 = vld [vmem:[%s3 + $0x48] sm:$0xff]
  %v167 = vld [vmem:[%s3 + $0x50] sm:$0xff]
  %v168 = vld [vmem:[%s3 + $0x58] sm:$0xff]
  %v169 = vld [vmem:[%s3 + $0x60] sm:$0xff]
  %v170 = vld [vmem:[%s3 + $0x68] sm:$0xff]
  %v171 = vld [vmem:[%s3 + $0x70] sm:$0xff]
  %v172 = vld [vmem:[%s3 + $0x78] sm:$0xff]
  %173 = vmatpush.msra.mxu0 %v172
  %174 = vmatpush.msra.mxu0 %v171
  %175 = vmatpush.msra.mxu0 %v170
  %176 = vmatpush.msra.mxu0 %v169
  %177 = vmatpush.msra.mxu0 %v168
  %178 = vmatpush.msra.mxu0 %v167
  %179 = vmatpush.msra.mxu0 %v166
  %180 = vmatpush.msra.mxu0 %v165
  %181 = vmatpush.msra.mxu0 %v164
  %182 = vmatpush.msra.mxu0 %v163
  %183 = vmatpush.msra.mxu0 %v162
  %184 = vmatpush.msra.mxu0 %v161
  %185 = vmatpush.msra.mxu0 %v160
  %186 = vmatpush.msra.mxu0 %v159
  %187 = vmatpush.msra.mxu0 %v158
  %188 = vmatpush.msra.mxu0 %v157
  %189 = vmatmul.f32.gmra.mxu0 %v153
  %v190 = vpop.f32.mrf.mxu0
  %v191 = vadd.f32 0.0, %v190
  %192 = vmatmul.f32.gmra.mxu0 %v154
  %v193 = vpop.f32.mrf.mxu0
  %v194 = vadd.f32 0.0, %v193
  %195 = vdwg.mxu0
  %v196 = vadd.f32 %v155, %v191
  %v197 = vadd.f32 %v156, %v194
  %198 = vst [vmem:[#allocation2] sm:$0xff] %v196
  %199 = vst [vmem:[#allocation2 + $0x8] sm:$0xff] %v197
  %v200 = vld [vmem:[#allocation2] sm:$0xff]
  %v201 = vld [vmem:[#allocation2 + $0x8] sm:$0xff]
  %v202 = vld [vmem:[%s4] sm:$0x1]
  %v204 = vperm.slane %v202, 0
  %v206 = vadd.f32 %v200, %v204
  %v207 = vadd.f32 %v201, %v204
  %208 = vst [vmem:[%s5] sm:$0xff] %v206
  %209 = vst [vmem:[%s5 + $0x8] sm:$0xff] %v207
  // Predicated region
  $region22: #{position_wise_feed_forward.1} parent=0 // pred_check
    _
  $region23: #{position_wise_feed_forward.1} parent=0 // pred_check_branch
    %211 = sbr.rel (0) target = $region25
  $region24: #{position_wise_feed_forward.1} parent=0 // pred_region
    _
  $region25: #{position_wise_feed_forward.1} parent=0 // pred_fallthru
    _
  // Predicated region
  $region26: #{position_wise_feed_forward.1} parent=0 // pred_check
    _
  $region27: #{position_wise_feed_forward.1} parent=0 // pred_check_branch
    %213 = sbr.rel (0) target = $region29
  $region28: #{position_wise_feed_forward.1} parent=0 // pred_region
    _
  $region29: #{position_wise_feed_forward.1} parent=0 // pred_fallthru
    _

</llo_original>
